<compile_context>
chip_gen: v7x
topology: tpu7x:2x2x1
jax: 0.10.0
libtpu: 0.0.40
codegen_flags: <defaults>
</compile_context>

<pallas_src>
import jax
import jax.numpy as jnp
from jax.experimental import pallas as pl
from jax.experimental.pallas import tpu as pltpu

N_COEFFS = 3
LANES = 128


def _cdiv(a, b):
    return (a + b - 1) // b


def _round_up(a, b):
    return _cdiv(a, b) * b


def poly_kernel(coeffs_ref, x12_ref, o_ref):
    # coeffs_ref: (3,) f32 in SMEM.
    # x12_ref: (2, block_rows, 128) in VMEM -> [0] = x[:,1], [1] = x[:,2].
    # o_ref:   (block_rows, 128) in VMEM (lane-dense, unmasked stores).
    c0 = coeffs_ref[0]
    c1 = coeffs_ref[1]
    c2 = coeffs_ref[2]
    x1 = x12_ref[0].astype(jnp.float32)
    x2 = x12_ref[1].astype(jnp.float32)
    # out = c0 + c1*x1 + c2*x2^2   (x**0 == 1 folded into the constant c0 term)
    o_ref[...] = (c0 + c1 * x1 + (c2 * x2) * x2).astype(o_ref.dtype)


def simple_model_forward(coeffs, x, *, block_rows=1024, jnp_fastpath_max_b=32768):
    """coeffs: (3,) f32, x: (B, 3) -> (B, 1)."""
    B, n = x.shape
    assert n == N_COEFFS
    dtype = x.dtype

    # Small-batch fast path: fixed pallas_call + layout plumbing dominates for
    # small B; a fused jnp expression is strictly faster there.
    if B <= jnp_fastpath_max_b:
        c = coeffs.astype(jnp.float32)
        x1 = x[:, 1].astype(jnp.float32)
        x2 = x[:, 2].astype(jnp.float32)
        return (c[0] + c[1] * x1 + (c[2] * x2) * x2).astype(dtype).reshape(B, 1)

    # Lane-dense layout: batch on the 128-lane axis.
    rows = _cdiv(B, LANES)
    # Target >= ~8 grid steps when the batch is large enough (software
    # pipelining: writeback of block i-1 overlaps fetch of i+1, and the
    # "parallel" axis shards across v7x's two TensorCores). Blocks are capped
    # at block_rows (1024 rows = 1 MiB/operand f32, safe double-buffered on
    # v5e/v6e/v7x scoped-VMEM defaults) and floored at 16 rows (bf16 tile).
    target = _round_up(_cdiv(rows, 8), 16)
    br = max(16, min(_round_up(block_rows, 16), target))
    num_blocks = _cdiv(rows, br)
    rows_pad = num_blocks * br
    b_pad = rows_pad * LANES

    x1 = x[:, 1]
    x2 = x[:, 2]
    if b_pad != B:
        x1 = jnp.pad(x1, (0, b_pad - B))
        x2 = jnp.pad(x2, (0, b_pad - B))
    # One stacked operand -> one producer fusion + one DMA stream per step.
    x12 = jnp.stack(
        [x1.reshape(rows_pad, LANES), x2.reshape(rows_pad, LANES)], axis=0)
    c = coeffs.astype(jnp.float32)

    out2d = pl.pallas_call(
        poly_kernel,
        out_shape=jax.ShapeDtypeStruct((rows_pad, LANES), dtype),
        grid=(num_blocks,),
        in_specs=[
            # Three scalar coefficients, whole array in SMEM (no VMEM tile).
            pl.BlockSpec(memory_space=pltpu.MemorySpace.SMEM),
            pl.BlockSpec((2, br, LANES), lambda i: (0, i, 0)),
        ],
        out_specs=pl.BlockSpec((br, LANES), lambda i: (i, 0)),
        compiler_params=pltpu.CompilerParams(
            dimension_semantics=("parallel",),
            vmem_limit_bytes=32 * 1024 * 1024,
            # Let XLA fuse the slice/pad/reshape/stack producer of x12 into the
            # pallas operand instead of writing it to HBM first.
            allow_input_fusion=[False, True],
        ),
    )(c, x12)

    # Only pay for the de-padding copy when padding was actually added.
    if b_pad == B:
        return out2d.reshape(B, 1)
    return out2d.reshape(b_pad)[:B].reshape(B, 1)


def _reference(coeffs, x):
    powers = jnp.arange(N_COEFFS, dtype=x.dtype)
    return jnp.sum(coeffs * x ** powers, axis=1, keepdims=True)


if __name__ == "__main__":
    key = jax.random.PRNGKey(0)
    k_coeffs, k_x1, k_x2 = jax.random.split(key, 3)

    # Deterministic parameter init (matches nn.Parameter(torch.randn(3)) shape).
    coeffs = jax.random.normal(k_coeffs, (N_COEFFS,), dtype=jnp.float32)

    # Small demo batch, consistent with the module's (B, 3) input.
    # Force the Pallas path (disable the jnp fast path) to exercise the kernel.
    B = 8
    x_small = jax.random.normal(k_x1, (B, N_COEFFS), dtype=jnp.float32)
    out_small = jax.block_until_ready(
        simple_model_forward(coeffs, x_small, jnp_fastpath_max_b=0))
    assert out_small.shape == (B, 1)
    assert jnp.allclose(out_small, _reference(coeffs, x_small), atol=1e-5, rtol=1e-5)

    # Non-multiple-of-128 batch that exercises a multi-step grid + padding.
    B2 = 4168
    x_big = jax.random.normal(k_x2, (B2, N_COEFFS), dtype=jnp.float32)
    out_big = jax.block_until_ready(
        simple_model_forward(coeffs, x_big, jnp_fastpath_max_b=0))
    assert out_big.shape == (B2, 1)
    assert jnp.allclose(out_big, _reference(coeffs, x_big), atol=1e-5, rtol=1e-5)

    # Default call exercises the small-batch jnp fast path; results must match.
    out_fast = jax.block_until_ready(simple_model_forward(coeffs, x_small))
    assert jnp.allclose(out_fast, out_small, atol=1e-5, rtol=1e-5)

    print("KERNEL_OK")
</pallas_src>

<mosaic_0001>
module attributes {stable_mosaic.version = 11 : i64} {
  func.func @poly_kernel(%arg0: i32, %arg1: memref<3xf32, #tpu.memory_space<smem>>, %arg2: memref<2x16x128xf32, #tpu.memory_space<vmem>>, %arg3: memref<16x128xf32, #tpu.memory_space<vmem>>) attributes {dimension_semantics = [#tpu.dimension_semantics<parallel>], iteration_bounds = array<i64: 1>, scalar_prefetch = 0 : i64, scratch_operands = 0 : i64, tpu.core_type = #tpu.core_type<tc>, window_params = [{transform_indices = @transform_0, window_bounds = array<i64: 3>}, {transform_indices = @transform_1, window_bounds = array<i64: 2, 16, 128>}, {transform_indices = @transform_2, window_bounds = array<i64: 16, 128>}]} {
    %c0 = arith.constant 0 : index
    %0 = memref.load %arg1[%c0] : memref<3xf32, #tpu.memory_space<smem>>
    %c1 = arith.constant 1 : index
    %1 = memref.load %arg1[%c1] : memref<3xf32, #tpu.memory_space<smem>>
    %c2 = arith.constant 2 : index
    %2 = memref.load %arg1[%c2] : memref<3xf32, #tpu.memory_space<smem>>
    %c0_0 = arith.constant 0 : index
    %c0_1 = arith.constant 0 : index
    %c0_2 = arith.constant 0 : index
    %3 = vector.load %arg2[%c0_0, %c0_1, %c0_2] : memref<2x16x128xf32, #tpu.memory_space<vmem>>, vector<1x16x128xf32>
    %4 = vector.shape_cast %3 : vector<1x16x128xf32> to vector<16x128xf32>
    %c1_3 = arith.constant 1 : index
    %c0_4 = arith.constant 0 : index
    %c0_5 = arith.constant 0 : index
    %5 = vector.load %arg2[%c1_3, %c0_4, %c0_5] : memref<2x16x128xf32, #tpu.memory_space<vmem>>, vector<1x16x128xf32>
    %6 = vector.shape_cast %5 : vector<1x16x128xf32> to vector<16x128xf32>
    %7 = vector.broadcast %1 : f32 to vector<16x128xf32>
    %8 = arith.mulf %7, %4 : vector<16x128xf32>
    %9 = vector.broadcast %0 : f32 to vector<16x128xf32>
    %10 = arith.addf %9, %8 : vector<16x128xf32>
    %11 = vector.broadcast %2 : f32 to vector<16x128xf32>
    %12 = arith.mulf %11, %6 : vector<16x128xf32>
    %13 = arith.mulf %12, %6 : vector<16x128xf32>
    %14 = arith.addf %10, %13 : vector<16x128xf32>
    %c0_6 = arith.constant 0 : index
    %c0_7 = arith.constant 0 : index
    %15 = vector.load %arg3[%c0_6, %c0_7] : memref<16x128xf32, #tpu.memory_space<vmem>>, vector<16x128xf32>
    tpu.vector_store %arg3[%c0_6, %c0_7], %14 {strides = array<i32>} : memref<16x128xf32, #tpu.memory_space<vmem>>, vector<16x128xf32>,
    return
  }
  func.func @transform_0(%arg0: i32) -> i32 {
    %c0_i32 = arith.constant 0 : i32
    %c0_i32_0 = arith.constant 0 : i32
    return %c0_i32 : i32
  }
  func.func @transform_1(%arg0: i32) -> (i32, i32, i32) {
    %c0_i32 = arith.constant 0 : i32
    %c0_i32_0 = arith.constant 0 : i32
    %c0_i32_1 = arith.constant 0 : i32
    return %c0_i32, %arg0, %c0_i32_0 : i32, i32, i32
  }
  func.func @transform_2(%arg0: i32) -> (i32, i32) {
    %c0_i32 = arith.constant 0 : i32
    %c0_i32_0 = arith.constant 0 : i32
    return %arg0, %c0_i32 : i32, i32
  }
}

</mosaic_0001>

<llo_original>
// kernel: tpu_custom_call.1
$region0: #{tpu_custom_call.1}
  #allocation0 [shape = 'u32[]', space=smem, size = 0x4, offset = 0x4, fixed_abs, tag = 'smem constant byte address 0x4 - core index']
  #allocation1 [shape = 'u32[144,128]{1,0:T(1,128)}', space=vmem, size = 0x12000, scoped, tag = 'internal scratch']
  %s0 = inlined_call_operand.hbm [shape: f32[3], index: 0, kind: input, shape index: {}]
  %s1 = inlined_call_operand.hbm [shape: f32[2,16,128], index: 1, kind: input, shape index: {}]
  %s2 = inlined_call_operand.hbm [shape: f32[16,128], index: 2, kind: output, shape index: {}]
  %s3 = sld [smem:[#allocation0]]
  $region26: #{tpu_custom_call.1} parent=0
    _
  %s5 = ssub.s32 1, %s3
  %s6 = scalar_select 0, %s5, %s3
  $region1: #{tpu_custom_call.1} parent=0
    #allocation2 [shape = 'u8[512]{0}', space=smem, size = 0x200, scoped, tag = 'input window, operand 0, single buffered']
    #allocation3 [shape = 's32[1]{0}', space=sflag, size = 0x4, scoped, tag = 'scoped memory for tpu_custom_call.1']
    #allocation4 [shape = 's32[1]{0}', space=sflag, size = 0x4, scoped, tag = 'scoped memory for tpu_custom_call.1']
    #allocation5 [shape = 's32[1]{0}', space=sflag, size = 0x4, scoped, tag = 'scoped memory for tpu_custom_call.1']
    #allocation6 [shape = 'u8[16384]{0}', space=vmem, size = 0x4000, scoped, tag = 'input window, operand 1, single buffered']
    #allocation7 [shape = 'u8[8192]{0}', space=vmem, size = 0x2000, scoped, tag = 'output window, operand 0, single buffered']
    %7 = vsyncpa [#allocation5], 0
    %8 = vsyncpa [#allocation3], 0
    %9 = vsyncpa [#allocation4], 0
    // Predicated region
    $region2: #{tpu_custom_call.1} parent=1 // pred_check
      _
    $region3: #{tpu_custom_call.1} parent=1 // pred_check_branch
      %11 = sbr.rel (0) target = $region5
    $region4: #{tpu_custom_call.1} parent=1 // pred_region
      %s13 = ssub.s32 16, 16
      %14 = vsyncadd [#allocation5], %s13
      %17 = dma.hbm_to_smem %s0, 16, [#allocation2], [#allocation5]
    $region5: #{tpu_custom_call.1} parent=1 // pred_fallthru
      _
    // Predicated region
    $region6: #{tpu_custom_call.1} parent=1 // pred_check
      _
    $region7: #{tpu_custom_call.1} parent=1 // pred_check_branch
      %19 = sbr.rel (0) target = $region9
    $region8: #{tpu_custom_call.1} parent=1 // pred_region
      %s21 = ssub.s32 512, 512
      %22 = vsyncadd [#allocation3], %s21
      %s23 = sshll.u32 [#allocation6], 4
      %s24 = int_to_ptr.vmem [resolvable:$true] %s23
      %29 = dma.hbm_to_vmem [thread:$0]  %s1, 512, %s24, [#allocation3], 128, 128, 8
    $region9: #{tpu_custom_call.1} parent=1 // pred_fallthru
      _
    // Predicated region
    $region10: #{tpu_custom_call.1} parent=1 // pred_check
      _
    $region11: #{tpu_custom_call.1} parent=1 // pred_check_branch
      %31 = sbr.rel (0) target = $region13
    $region12: #{tpu_custom_call.1} parent=1 // pred_region
      %32 = dma.done [#allocation5], 16
    $region13: #{tpu_custom_call.1} parent=1 // pred_fallthru
      _
    // Predicated region
    $region14: #{tpu_custom_call.1} parent=1 // pred_check
      _
    $region15: #{tpu_custom_call.1} parent=1 // pred_check_branch
      %34 = sbr.rel (0) target = $region17
    $region16: #{tpu_custom_call.1} parent=1 // pred_region
      %35 = dma.done [#allocation3], 512
    $region17: #{tpu_custom_call.1} parent=1 // pred_fallthru
      _
    %36 = sfence
    %s37 = sld [smem:[#allocation2]]
    %s38 = sld [smem:[#allocation2 + $0x1]]
    %s39 = sld [smem:[#allocation2 + $0x2]]
    %v40 = vld [vmem:[#allocation6] sm:$0xff]
    %v41 = vld [vmem:[#allocation6 + $0x8] sm:$0xff]
    %s42 = scalar_lea.vmem [#allocation6], 16
    %v43 = vld [vmem:[%s42] sm:$0xff]
    %v44 = vld [vmem:[%s42 + $0x8] sm:$0xff]
    %v45 = vstv %s38
    %v46 = vmul.f32 %v45, %v40
    %v47 = vmul.f32 %v45, %v41
    %v48 = vstv %s37
    %v49 = vadd.f32 %v48, %v46
    %v50 = vadd.f32 %v48, %v47
    %v51 = vstv %s39
    %v52 = vmul.f32 %v51, %v43
    %v53 = vmul.f32 %v51, %v44
    %v54 = vmul.f32 %v52, %v43
    %v55 = vmul.f32 %v53, %v44
    %v56 = vadd.f32 %v49, %v54
    %v57 = vadd.f32 %v50, %v55
    %58 = vst [vmem:[#allocation7] sm:$0xff] %v56
    %59 = vst [vmem:[#allocation7 + $0x8] sm:$0xff] %v57
    // Predicated region
    $region18: #{tpu_custom_call.1} parent=1 // pred_check
      _
    $region19: #{tpu_custom_call.1} parent=1 // pred_check_branch
      %61 = sbr.rel (0) target = $region21
    $region20: #{tpu_custom_call.1} parent=1 // pred_region
      %s63 = ssub.s32 256, 256
      %64 = vsyncadd [#allocation4], %s63
      %s65 = sshll.u32 [#allocation7], 4
      %s66 = int_to_ptr.vmem [resolvable:$true] %s65
      %71 = dma.vmem_to_hbm [thread:$0]  %s66, 256, %s2, [#allocation4], 128, 128, 8
    $region21: #{tpu_custom_call.1} parent=1 // pred_fallthru
      _
    // Predicated region
    $region22: #{tpu_custom_call.1} parent=1 // pred_check
      _
    $region23: #{tpu_custom_call.1} parent=1 // pred_check_branch
      %73 = sbr.rel (0) target = $region25
    $region24: #{tpu_custom_call.1} parent=1 // pred_region
      %74 = dma.done [#allocation4], 256
    $region25: #{tpu_custom_call.1} parent=1 // pred_fallthru
      _
    %75 = vsyncpa [#allocation3], 1
    %76 = vsyncpa [#allocation4], 1
    %77 = vsyncpa [#allocation5], 1

</llo_original>
